<compile_context>
chip_gen: v7x
topology: tpu7x:2x2x1
jax: 0.10.0
libtpu: 0.0.40
codegen_flags: <defaults>
</compile_context>

<pallas_src>
import functools
import math

import jax
import jax.numpy as jnp
from jax.experimental import pallas as pl
from jax.experimental.pallas import tpu as pltpu

_LANES = 128
_SUBLANES = 8
_MAX_TILE_ROWS = 1024   # 512 KiB f32 per input per buffer; safe on v5e/v6e/v7x
_ROW_ALIGN = 32         # covers min sublane tiling for f32 (8), bf16 (16), i8 (32)


def _l1_loss_kernel(pred_ref, gold_ref, sum_ref, cnt_ref, *,
                    tile_rows, inner, n_full_rows, n_rem):
    p = pl.program_id(0)   # "parallel" axis (TensorCore split on v7x)
    i = pl.program_id(1)   # "arbitrary" reduction axis over row-tiles

    # Zero the resident (8,128) partial accumulators at the start of each p's
    # reduction (output block index depends only on p, so it stays resident).
    @pl.when(i == 0)
    def _():
        sum_ref[...] = jnp.zeros_like(sum_ref)
        cnt_ref[...] = jnp.zeros_like(cnt_ref)

    # Logical block id.  The DMA index_map clamps to the last real block, so
    # logically out-of-range blocks simply re-read data that is then fully
    # masked out below.
    block_id = p * inner + i

    pred = pred_ref[...].astype(jnp.float32)
    gold = gold_ref[...].astype(jnp.float32)

    row = (jax.lax.broadcasted_iota(jnp.int32, (tile_rows, _LANES), 0)
           + block_id * tile_rows)
    lane = jax.lax.broadcasted_iota(jnp.int32, (tile_rows, _LANES), 1)
    in_bounds = (row < n_full_rows) | ((row == n_full_rows) & (lane < n_rem))
    mask = in_bounds & jnp.isfinite(gold)

    diff = jnp.where(mask, jnp.abs(pred - gold), 0.0)
    cnt = jnp.where(mask, 1.0, 0.0)

    # Fold (tile_rows, 128) -> (8, 128) using only VPU vreg adds (no XLU, no
    # masked scalar stores in the hot loop).
    fold = tile_rows // _SUBLANES
    sum_ref[...] += diff.reshape(fold, _SUBLANES, _LANES).sum(axis=0)
    cnt_ref[...] += cnt.reshape(fold, _SUBLANES, _LANES).sum(axis=0)


@functools.partial(jax.jit, static_argnames=("reduction",))
def l1_distance_loss(pred, gold, reduction: str = "mean"):
    assert pred.shape == gold.shape
    out_dtype = jnp.result_type(pred.dtype, gold.dtype)

    n = math.prod(pred.shape)
    if n == 0:
        return jnp.zeros((), dtype=out_dtype)

    pred_f = pred.reshape(-1)
    gold_f = gold.reshape(-1)

    # Lay the flat stream out as a lane-dense (rows, 128) slab.  Tail elements
    # (and any DMA over-read in a partial last block) are excluded in-kernel
    # by the bounds mask, so padding values never matter.
    rows_unpadded = -(-n // _LANES)
    if rows_unpadded >= _MAX_TILE_ROWS:
        tile_rows = _MAX_TILE_ROWS
        padded_n = rows_unpadded * _LANES          # only lane alignment
    else:
        # Small input (< 512 KiB of rows): make one exact, well-aligned block.
        rows_aligned = max(
            _ROW_ALIGN,
            ((rows_unpadded + _ROW_ALIGN - 1) // _ROW_ALIGN) * _ROW_ALIGN)
        tile_rows = rows_aligned
        padded_n = rows_aligned * _LANES
    if padded_n != n:
        pred_f = jnp.pad(pred_f, (0, padded_n - n))
        gold_f = jnp.pad(gold_f, (0, padded_n - n))
    rows = padded_n // _LANES
    pred2d = pred_f.reshape(rows, _LANES)
    gold2d = gold_f.reshape(rows, _LANES)

    num_blocks = -(-rows // tile_rows)
    num_par = 2 if num_blocks >= 2 else 1          # v7x: one half per TensorCore
    inner = -(-num_blocks // num_par)

    def _in_index(p, i):
        # Clamp so the generated DMA never targets an out-of-range block.
        return (jnp.minimum(p * inner + i, num_blocks - 1), 0)

    kernel = functools.partial(
        _l1_loss_kernel,
        tile_rows=tile_rows,
        inner=inner,
        n_full_rows=n // _LANES,
        n_rem=n % _LANES,
    )

    sum_part, cnt_part = pl.pallas_call(
        kernel,
        out_shape=(
            jax.ShapeDtypeStruct((num_par, _SUBLANES, _LANES), jnp.float32),
            jax.ShapeDtypeStruct((num_par, _SUBLANES, _LANES), jnp.float32),
        ),
        grid_spec=pltpu.PrefetchScalarGridSpec(
            num_scalar_prefetch=0,
            grid=(num_par, inner),
            in_specs=[
                pl.BlockSpec((tile_rows, _LANES), _in_index),
                pl.BlockSpec((tile_rows, _LANES), _in_index),
            ],
            out_specs=[
                pl.BlockSpec((None, _SUBLANES, _LANES), lambda p, i: (p, 0, 0)),
                pl.BlockSpec((None, _SUBLANES, _LANES), lambda p, i: (p, 0, 0)),
            ],
        ),
        compiler_params=pltpu.CompilerParams(
            dimension_semantics=("parallel", "arbitrary"),
        ),
    )(pred2d, gold2d)

    # Tiny final reduce of num_par * 8 * 128 partials (lane/sublane reduce
    # happens once here, outside the streaming loop).
    s = sum_part.sum()
    c = cnt_part.sum()

    if reduction == "sum":
        out = jnp.where(c > 0, s, 0.0)
    elif reduction == "mean":
        out = jnp.where(c > 0, s / jnp.maximum(c, 1.0), 0.0)
    else:
        # TODO(synk): reduction='none' returns a data-dependent-shaped gather
        # (pred[valid]); no clean jit/Pallas equivalent, so it is not supported.
        raise NotImplementedError("reduction='none' not supported")
    return out.astype(out_dtype)


def _reference(pred, gold, reduction="mean"):
    pred = pred.astype(jnp.float32)
    gold = gold.astype(jnp.float32)
    valid = jnp.isfinite(gold)
    diff = jnp.where(valid, jnp.abs(pred - gold), 0.0)
    cnt = valid.sum()
    if reduction == "sum":
        return jnp.where(cnt > 0, diff.sum(), 0.0)
    return jnp.where(cnt > 0, diff.sum() / jnp.maximum(cnt, 1), 0.0)


if __name__ == "__main__":
    key = jax.random.PRNGKey(0)
    k1, k2, k3, k4, k5 = jax.random.split(key, 5)

    # Structural-probe style inputs: batched pairwise-distance matrices.
    batch, seq = 2, 16
    pred = jax.random.normal(k1, (batch, seq, seq), dtype=jnp.float32)
    gold = jax.random.normal(k2, (batch, seq, seq), dtype=jnp.float32)
    # Mark ~25% of gold entries as invalid (padding) with NaN / inf.
    invalid = jax.random.uniform(k3, (batch, seq, seq)) < 0.25
    gold = jnp.where(invalid, jnp.nan, gold)
    gold = gold.at[0, 0, 0].set(jnp.inf)

    out = l1_distance_loss(pred, gold, reduction="mean")
    jax.block_until_ready(out)
    ref = _reference(pred, gold, reduction="mean")
    assert jnp.allclose(out, ref, rtol=1e-5, atol=1e-6), (out, ref)

    out_s = l1_distance_loss(pred, gold, reduction="sum")
    jax.block_until_ready(out_s)
    ref_s = _reference(pred, gold, reduction="sum")
    assert jnp.allclose(out_s, ref_s, rtol=1e-5, atol=1e-5), (out_s, ref_s)

    # Multi-block path (exercises the 2-wide parallel axis + partial last block).
    pred2 = jax.random.normal(k4, (4, 192, 192), dtype=jnp.float32)
    gold2 = jax.random.normal(k5, (4, 192, 192), dtype=jnp.float32)
    gold2 = jnp.where(jax.random.uniform(k3, (4, 192, 192)) < 0.1, jnp.inf, gold2)
    out2 = l1_distance_loss(pred2, gold2, reduction="mean")
    jax.block_until_ready(out2)
    ref2 = _reference(pred2, gold2, reduction="mean")
    assert jnp.allclose(out2, ref2, rtol=1e-4, atol=1e-5), (out2, ref2)

    # Non-lane-aligned flat size (exercises the in-kernel tail mask).
    pred3 = jax.random.normal(k4, (3, 17, 17), dtype=jnp.float32)
    gold3 = jax.random.normal(k5, (3, 17, 17), dtype=jnp.float32)
    gold3 = jnp.where(jax.random.uniform(k3, (3, 17, 17)) < 0.3, jnp.nan, gold3)
    out3 = l1_distance_loss(pred3, gold3, reduction="mean")
    jax.block_until_ready(out3)
    ref3 = _reference(pred3, gold3, reduction="mean")
    assert jnp.allclose(out3, ref3, rtol=1e-5, atol=1e-6), (out3, ref3)

    # Native bf16 streaming path (no wrapper upcast).
    pred_bf = pred.astype(jnp.bfloat16)
    gold_bf = gold.astype(jnp.bfloat16)
    out_bf = l1_distance_loss(pred_bf, gold_bf, reduction="mean")
    jax.block_until_ready(out_bf)
    ref_bf = _reference(pred_bf, gold_bf, reduction="mean")
    assert abs(float(out_bf) - float(ref_bf)) <= 2e-2 * max(1.0, abs(float(ref_bf)))

    # Degenerate case: no finite gold entries -> 0.0
    all_bad = jnp.full_like(gold, jnp.nan)
    out0 = l1_distance_loss(pred, all_bad, reduction="mean")
    jax.block_until_ready(out0)
    assert float(out0) == 0.0

    print("KERNEL_OK")
</pallas_src>

<mosaic_0001>
module attributes {stable_mosaic.version = 11 : i64} {
  func.func @_l1_loss_kernel(%arg0: i32, %arg1: i32, %arg2: memref<32x128xf32, #tpu.memory_space<vmem>>, %arg3: memref<32x128xf32, #tpu.memory_space<vmem>>, %arg4: memref<1x8x128xf32, #tpu.memory_space<vmem>>, %arg5: memref<1x8x128xf32, #tpu.memory_space<vmem>>) attributes {dimension_semantics = [#tpu.dimension_semantics<parallel>, #tpu.dimension_semantics<arbitrary>], iteration_bounds = array<i64: 1, 1>, scalar_prefetch = 0 : i64, scratch_operands = 0 : i64, tpu.core_type = #tpu.core_type<tc>, window_params = [{transform_indices = @transform_0, window_bounds = array<i64: 32, 128>}, {transform_indices = @transform_1, window_bounds = array<i64: 32, 128>}, {transform_indices = @transform_2, window_bounds = array<i64: 1, 8, 128>}, {transform_indices = @transform_3, window_bounds = array<i64: 1, 8, 128>}]} {
    %c0_i32 = arith.constant 0 : i32
    %0 = arith.cmpi eq, %arg1, %c0_i32 : i32
    %1 = arith.extui %0 : i1 to i32
    %c0_i32_0 = arith.constant 0 : i32
    %2 = arith.cmpi ne, %1, %c0_i32_0 : i32
    scf.if %2 {
      %cst_23 = arith.constant 0.000000e+00 : f32
      %46 = vector.broadcast %cst_23 : f32 to vector<8x128xf32>
      %c0_24 = arith.constant 0 : index
      %c0_25 = arith.constant 0 : index
      %c0_26 = arith.constant 0 : index
      %47 = vector.load %arg4[%c0_24, %c0_25, %c0_26] : memref<1x8x128xf32, #tpu.memory_space<vmem>>, vector<1x8x128xf32>
      %48 = vector.shape_cast %47 : vector<1x8x128xf32> to vector<8x128xf32>
      %49 = vector.shape_cast %46 : vector<8x128xf32> to vector<1x8x128xf32>
      tpu.vector_store %arg4[%c0_24, %c0_25, %c0_26], %49 {strides = array<i32>} : memref<1x8x128xf32, #tpu.memory_space<vmem>>, vector<1x8x128xf32>,
      %cst_27 = arith.constant 0.000000e+00 : f32
      %50 = vector.broadcast %cst_27 : f32 to vector<8x128xf32>
      %c0_28 = arith.constant 0 : index
      %c0_29 = arith.constant 0 : index
      %c0_30 = arith.constant 0 : index
      %51 = vector.load %arg5[%c0_28, %c0_29, %c0_30] : memref<1x8x128xf32, #tpu.memory_space<vmem>>, vector<1x8x128xf32>
      %52 = vector.shape_cast %51 : vector<1x8x128xf32> to vector<8x128xf32>
      %53 = vector.shape_cast %50 : vector<8x128xf32> to vector<1x8x128xf32>
      tpu.vector_store %arg5[%c0_28, %c0_29, %c0_30], %53 {strides = array<i32>} : memref<1x8x128xf32, #tpu.memory_space<vmem>>, vector<1x8x128xf32>,
    } else {
    }
    %c1_i32 = arith.constant 1 : i32
    %3 = arith.muli %arg0, %c1_i32 : i32
    %4 = arith.addi %3, %arg1 : i32
    %c0 = arith.constant 0 : index
    %c0_1 = arith.constant 0 : index
    %5 = vector.load %arg2[%c0, %c0_1] : memref<32x128xf32, #tpu.memory_space<vmem>>, vector<32x128xf32>
    %c0_2 = arith.constant 0 : index
    %c0_3 = arith.constant 0 : index
    %6 = vector.load %arg3[%c0_2, %c0_3] : memref<32x128xf32, #tpu.memory_space<vmem>>, vector<32x128xf32>
    %7 = tpu.iota {dimensions = array<i32: 0>} : vector<32x128xi32>
    %c32_i32 = arith.constant 32 : i32
    %8 = arith.muli %4, %c32_i32 : i32
    %9 = vector.broadcast %8 : i32 to vector<32x128xi32>
    %10 = arith.addi %7, %9 : vector<32x128xi32>
    %11 = tpu.iota {dimensions = array<i32: 1>} : vector<32x128xi32>
    %c4_i32 = arith.constant 4 : i32
    %12 = vector.broadcast %c4_i32 : i32 to vector<32x128xi32>
    %13 = arith.cmpi slt, %10, %12 : vector<32x128xi32>
    %c4_i32_4 = arith.constant 4 : i32
    %14 = vector.broadcast %c4_i32_4 : i32 to vector<32x128xi32>
    %15 = arith.cmpi eq, %10, %14 : vector<32x128xi32>
    %c0_i32_5 = arith.constant 0 : i32
    %16 = vector.broadcast %c0_i32_5 : i32 to vector<32x128xi32>
    %17 = arith.cmpi slt, %11, %16 : vector<32x128xi32>
    %18 = arith.andi %15, %17 : vector<32x128xi1>
    %19 = arith.ori %13, %18 : vector<32x128xi1>
    %20 = tpu.weird %6 : vector<32x128xf32> -> vector<32x128xi1>
    %cst = arith.constant dense<true> : vector<32x128xi1>
    %21 = arith.xori %20, %cst : vector<32x128xi1>
    %22 = arith.andi %19, %21 : vector<32x128xi1>
    %23 = arith.subf %5, %6 : vector<32x128xf32>
    %24 = math.absf %23 : vector<32x128xf32>
    %cst_6 = arith.constant 0.000000e+00 : f32
    %25 = vector.broadcast %cst_6 : f32 to vector<32x128xf32>
    %26 = arith.select %22, %24, %25 : vector<32x128xi1>, vector<32x128xf32>
    %cst_7 = arith.constant 1.000000e+00 : f32
    %cst_8 = arith.constant 0.000000e+00 : f32
    %27 = vector.broadcast %cst_7 : f32 to vector<32x128xf32>
    %28 = vector.broadcast %cst_8 : f32 to vector<32x128xf32>
    %29 = arith.select %22, %27, %28 : vector<32x128xi1>, vector<32x128xf32>
    %c0_9 = arith.constant 0 : index
    %c0_10 = arith.constant 0 : index
    %c0_11 = arith.constant 0 : index
    %30 = vector.load %arg4[%c0_9, %c0_10, %c0_11] : memref<1x8x128xf32, #tpu.memory_space<vmem>>, vector<1x8x128xf32>
    %31 = vector.shape_cast %30 : vector<1x8x128xf32> to vector<8x128xf32>
    %32 = vector.shape_cast %26 : vector<32x128xf32> to vector<4x8x128xf32>
    %cst_12 = arith.constant dense<0.000000e+00> : vector<8x128xf32>
    %33 = vector.multi_reduction <add>, %32, %cst_12 [0] : vector<4x8x128xf32> to vector<8x128xf32>
    %34 = arith.addf %31, %33 : vector<8x128xf32>
    %c0_13 = arith.constant 0 : index
    %c0_14 = arith.constant 0 : index
    %c0_15 = arith.constant 0 : index
    %35 = vector.load %arg4[%c0_13, %c0_14, %c0_15] : memref<1x8x128xf32, #tpu.memory_space<vmem>>, vector<1x8x128xf32>
    %36 = vector.shape_cast %35 : vector<1x8x128xf32> to vector<8x128xf32>
    %37 = vector.shape_cast %34 : vector<8x128xf32> to vector<1x8x128xf32>
    tpu.vector_store %arg4[%c0_13, %c0_14, %c0_15], %37 {strides = array<i32>} : memref<1x8x128xf32, #tpu.memory_space<vmem>>, vector<1x8x128xf32>,
    %c0_16 = arith.constant 0 : index
    %c0_17 = arith.constant 0 : index
    %c0_18 = arith.constant 0 : index
    %38 = vector.load %arg5[%c0_16, %c0_17, %c0_18] : memref<1x8x128xf32, #tpu.memory_space<vmem>>, vector<1x8x128xf32>
    %39 = vector.shape_cast %38 : vector<1x8x128xf32> to vector<8x128xf32>
    %40 = vector.shape_cast %29 : vector<32x128xf32> to vector<4x8x128xf32>
    %cst_19 = arith.constant dense<0.000000e+00> : vector<8x128xf32>
    %41 = vector.multi_reduction <add>, %40, %cst_19 [0] : vector<4x8x128xf32> to vector<8x128xf32>
    %42 = arith.addf %39, %41 : vector<8x128xf32>
    %c0_20 = arith.constant 0 : index
    %c0_21 = arith.constant 0 : index
    %c0_22 = arith.constant 0 : index
    %43 = vector.load %arg5[%c0_20, %c0_21, %c0_22] : memref<1x8x128xf32, #tpu.memory_space<vmem>>, vector<1x8x128xf32>
    %44 = vector.shape_cast %43 : vector<1x8x128xf32> to vector<8x128xf32>
    %45 = vector.shape_cast %42 : vector<8x128xf32> to vector<1x8x128xf32>
    tpu.vector_store %arg5[%c0_20, %c0_21, %c0_22], %45 {strides = array<i32>} : memref<1x8x128xf32, #tpu.memory_space<vmem>>, vector<1x8x128xf32>,
    return
  }
  func.func @transform_0(%arg0: i32, %arg1: i32) -> (i32, i32) {
    %c1_i32 = arith.constant 1 : i32
    %0 = arith.muli %arg0, %c1_i32 : i32
    %1 = arith.addi %0, %arg1 : i32
    %c0_i32 = arith.constant 0 : i32
    %2 = arith.minsi %1, %c0_i32 : i32
    %c0_i32_0 = arith.constant 0 : i32
    %c0_i32_1 = arith.constant 0 : i32
    return %2, %c0_i32_0 : i32, i32
  }
  func.func @transform_1(%arg0: i32, %arg1: i32) -> (i32, i32) {
    %c1_i32 = arith.constant 1 : i32
    %0 = arith.muli %arg0, %c1_i32 : i32
    %1 = arith.addi %0, %arg1 : i32
    %c0_i32 = arith.constant 0 : i32
    %2 = arith.minsi %1, %c0_i32 : i32
    %c0_i32_0 = arith.constant 0 : i32
    %c0_i32_1 = arith.constant 0 : i32
    return %2, %c0_i32_0 : i32, i32
  }
  func.func @transform_2(%arg0: i32, %arg1: i32) -> (i32, i32, i32) {
    %c0_i32 = arith.constant 0 : i32
    %c0_i32_0 = arith.constant 0 : i32
    %c0_i32_1 = arith.constant 0 : i32
    return %arg0, %c0_i32, %c0_i32_0 : i32, i32, i32
  }
  func.func @transform_3(%arg0: i32, %arg1: i32) -> (i32, i32, i32) {
    %c0_i32 = arith.constant 0 : i32
    %c0_i32_0 = arith.constant 0 : i32
    %c0_i32_1 = arith.constant 0 : i32
    return %arg0, %c0_i32, %c0_i32_0 : i32, i32, i32
  }
}

</mosaic_0001>

<llo_original>
// kernel: l1_distance_loss.1
$region0: #{l1_distance_loss.1}
  #allocation0 [shape = 'u32[]', space=smem, size = 0x4, offset = 0x4, fixed_abs, tag = 'smem constant byte address 0x4 - core index']
  #allocation1 [shape = 'u32[144,128]{1,0:T(1,128)}', space=vmem, size = 0x12000, scoped, tag = 'internal scratch']
  %s0 = inlined_call_operand.vmem [shape: f32[32,128], index: 0, kind: input, shape index: {}]
  %s1 = inlined_call_operand.vmem [shape: f32[32,128], index: 1, kind: input, shape index: {}]
  %s2 = inlined_call_operand.vmem [shape: f32[1,8,128], index: 2, kind: output, shape index: {0}]
  %s3 = inlined_call_operand.vmem [shape: f32[1,8,128], index: 3, kind: output, shape index: {1}]
  %4 = xla_tuple %s2, %s3
  %s5 = sld [smem:[#allocation0]]
  $region30: #{l1_distance_loss.1} parent=0
    _
  %s7 = ssub.s32 1, %s5
  %s8 = scalar_select 0, %s7, %s5
  // Predicated region
  $region2: #{l1_distance_loss.1} parent=0 // pred_check
    _
  $region3: #{l1_distance_loss.1} parent=0 // pred_check_branch
    %10 = sbr.rel (0) target = $region5
  $region4: #{l1_distance_loss.1} parent=0 // pred_region
    %s11 = sadd.s32 0, 0
    %p12 = scmp.lt.s32.totalorder %s11, 0
    %s13 = scalar_select %p12, %s11, 0
    %s14 = smul.u32 4, %s13
    %p15 = scmp.lt.s32.totalorder %s14, 3
    %s16 = scalar_select %p15, %s14, 3
    %s17 = smul.addr %s16, 8
    %s18 = scalar_lea.vmem %s0, %s17
    %s19 = sadd.s32 0, 0
    %p20 = scmp.lt.s32.totalorder %s19, 0
    %s21 = scalar_select %p20, %s19, 0
    %s22 = smul.u32 4, %s21
  $region5: #{l1_distance_loss.1} parent=0 // pred_fallthru
    _
  // Predicated region
  $region6: #{l1_distance_loss.1} parent=0 // pred_check
    _
  $region7: #{l1_distance_loss.1} parent=0 // pred_check_branch
    %24 = sbr.rel (0) target = $region9
  $region8: #{l1_distance_loss.1} parent=0 // pred_region
    %s25 = sadd.s32 0, 0
    %p26 = scmp.lt.s32.totalorder %s25, 0
    %s27 = scalar_select %p26, %s25, 0
    %s28 = smul.u32 4, %s27
    %p29 = scmp.lt.s32.totalorder %s28, 3
    %s30 = scalar_select %p29, %s28, 3
    %s31 = smul.addr %s30, 8
    %s32 = scalar_lea.vmem %s1, %s31
    %s33 = sadd.s32 0, 0
    %p34 = scmp.lt.s32.totalorder %s33, 0
    %s35 = scalar_select %p34, %s33, 0
    %s36 = smul.u32 4, %s35
  $region9: #{l1_distance_loss.1} parent=0 // pred_fallthru
    _
  %s37 = sadd.s32 0, 0
  %p38 = scmp.lt.s32.totalorder %s37, 0
  %s39 = scalar_select %p38, %s37, 0
  %s40 = smul.u32 4, %s39
  %p41 = scmp.lt.s32.totalorder %s40, 3
  %s42 = scalar_select %p41, %s40, 3
  %s43 = smul.addr %s42, 8
  %s44 = scalar_lea.vmem %s0, %s43
  %s45 = sadd.s32 0, 0
  %p46 = scmp.lt.s32.totalorder %s45, 0
  %s47 = scalar_select %p46, %s45, 0
  %s48 = smul.u32 4, %s47
  %p49 = scmp.lt.s32.totalorder %s48, 3
  %s50 = scalar_select %p49, %s48, 3
  %s51 = smul.addr %s50, 8
  %s52 = scalar_lea.vmem %s1, %s51
  %s53 = sadd.s32 0, 0
  %p54 = scmp.lt.s32.totalorder %s53, 0
  %s55 = scalar_select %p54, %s53, 0
  %s56 = smul.u32 4, %s55
  %p57 = scmp.lt.s32.totalorder %s56, 3
  %s58 = scalar_select %p57, %s56, 3
  %s59 = smul.addr %s58, 8
  %s60 = scalar_lea.vmem %s0, %s59
  %s61 = sadd.s32 0, 0
  %p62 = scmp.lt.s32.totalorder %s61, 0
  %s63 = scalar_select %p62, %s61, 0
  %s64 = smul.u32 4, %s63
  %s65 = sadd.s32 0, 0
  %p66 = scmp.lt.s32.totalorder %s65, 0
  %s67 = scalar_select %p66, %s65, 0
  %s68 = smul.u32 4, %s67
  %p69 = scmp.lt.s32.totalorder %s68, 3
  %s70 = scalar_select %p69, %s68, 3
  %s71 = smul.addr %s70, 8
  %s72 = scalar_lea.vmem %s1, %s71
  %s73 = sadd.s32 0, 0
  %p74 = scmp.lt.s32.totalorder %s73, 0
  %s75 = scalar_select %p74, %s73, 0
  %s76 = smul.u32 4, %s75
  %p77 = scmp.eq.s32.totalorder 0, 0
  // Predicated region
  $region10: #{l1_distance_loss.1} parent=0 // pred_check
    %p78 = pneg %p77
  $region11: #{l1_distance_loss.1} parent=0 // pred_check_branch
    %80 = sbr.rel (%p78) target = $region13
  $region12: #{l1_distance_loss.1} parent=0 // pred_region
    %81 = vst [vmem:[%s2] sm:$0xff] 0.0
    %82 = vst [vmem:[%s3] sm:$0xff] 0.0
  $region13: #{l1_distance_loss.1} parent=0 // pred_fallthru
    _
  %s83 = sadd.s32 0, 0
  %v84 = vld [vmem:[%s60] sm:$0xff]
  %v85 = vld [vmem:[%s60 + $0x8] sm:$0xff]
  %v86 = vld [vmem:[%s60 + $0x10] sm:$0xff]
  %v87 = vld [vmem:[%s60 + $0x18] sm:$0xff]
  %v88 = vld [vmem:[%s72] sm:$0xff]
  %v89 = vld [vmem:[%s72 + $0x8] sm:$0xff]
  %v90 = vld [vmem:[%s72 + $0x10] sm:$0xff]
  %v91 = vld [vmem:[%s72 + $0x18] sm:$0xff]
  %v92 = vlaneseq
  %v93 = vshrl.u32 %v92, 7
  %v94 = vadd.s32 %v93, 8
  %v95 = vadd.s32 %v93, 16
  %v96 = vadd.s32 %v93, 24
  %s97 = smul.u32 %s83, 32
  %v98 = vstv %s97
  %v99 = vadd.s32 %v93, %v98
  %v100 = vadd.s32 %v94, %v98
  %v101 = vadd.s32 %v95, %v98
  %v102 = vadd.s32 %v96, %v98
  %v103 = vlaneseq
  %v104 = vand.u32 %v103, 127
  %vm105 = vcmp.lt.s32.totalorder %v99, 4
  %vm106 = vcmp.lt.s32.totalorder %v100, 4
  %vm107 = vcmp.lt.s32.totalorder %v101, 4
  %vm108 = vcmp.lt.s32.totalorder %v102, 4
  %vm109 = vcmp.eq.s32.totalorder %v99, 4
  %vm110 = vcmp.eq.s32.totalorder %v100, 4
  %vm111 = vcmp.eq.s32.totalorder %v101, 4
  %vm112 = vcmp.eq.s32.totalorder %v102, 4
  %vm113 = vcmp.lt.s32.totalorder %v104, 0
  %vm114 = vmand %vm109, %vm113
  %vm115 = vmand %vm110, %vm113
  %vm116 = vmand %vm111, %vm113
  %vm117 = vmand %vm112, %vm113
  %vm118 = vmor %vm105, %vm114
  %vm119 = vmor %vm106, %vm115
  %vm120 = vmor %vm107, %vm116
  %vm121 = vmor %vm108, %vm117
  %vm122 = vweird.f32 %v88
  %vm123 = vweird.f32 %v89
  %vm124 = vweird.f32 %v90
  %vm125 = vweird.f32 %v91
  %vm126 = vmxor %vm122, 1
  %vm127 = vmxor %vm123, 1
  %vm128 = vmxor %vm124, 1
  %vm129 = vmxor %vm125, 1
  %vm130 = vmand %vm118, %vm126
  %vm131 = vmand %vm119, %vm127
  %vm132 = vmand %vm120, %vm128
  %vm133 = vmand %vm121, %vm129
  %v134 = vsub.f32 %v84, %v88
  %v135 = vsub.f32 %v85, %v89
  %v136 = vsub.f32 %v86, %v90
  %v137 = vsub.f32 %v87, %v91
  %v138 = vand.u32 2147483647, %v134
  %v139 = vand.u32 2147483647, %v135
  %v140 = vand.u32 2147483647, %v136
  %v141 = vand.u32 2147483647, %v137
  %v142 = vsel %vm130, %v138, 0.0
  %v143 = vsel %vm131, %v139, 0.0
  %v144 = vsel %vm132, %v140, 0.0
  %v145 = vsel %vm133, %v141, 0.0
  %v146 = vsel %vm130, 1.0, 0.0
  %v147 = vsel %vm131, 1.0, 0.0
  %v148 = vsel %vm132, 1.0, 0.0
  %v149 = vsel %vm133, 1.0, 0.0
  %v150 = vld [vmem:[%s2] sm:$0xff]
  %v151 = vadd.f32 %v142, %v143
  %v152 = vadd.f32 %v151, %v144
  %v153 = vadd.f32 %v152, %v145
  %v154 = vadd.f32 %v150, %v153
  %155 = vst [vmem:[%s2] sm:$0xff] %v154
  %v156 = vld [vmem:[%s3] sm:$0xff]
  %v157 = vadd.f32 %v146, %v147
  %v158 = vadd.f32 %v157, %v148
  %v159 = vadd.f32 %v158, %v149
  %v160 = vadd.f32 %v156, %v159
  %161 = vst [vmem:[%s3] sm:$0xff] %v160
  // Predicated region
  $region14: #{l1_distance_loss.1} parent=0 // pred_check
    _
  $region15: #{l1_distance_loss.1} parent=0 // pred_check_branch
    %163 = sbr.rel (0) target = $region17
  $region16: #{l1_distance_loss.1} parent=0 // pred_region
    _
  $region17: #{l1_distance_loss.1} parent=0 // pred_fallthru
    _
  // Predicated region
  $region18: #{l1_distance_loss.1} parent=0 // pred_check
    _
  $region19: #{l1_distance_loss.1} parent=0 // pred_check_branch
    %165 = sbr.rel (0) target = $region21
  $region20: #{l1_distance_loss.1} parent=0 // pred_region
    _
  $region21: #{l1_distance_loss.1} parent=0 // pred_fallthru
    _
  // Predicated region
  $region22: #{l1_distance_loss.1} parent=0 // pred_check
    _
  $region23: #{l1_distance_loss.1} parent=0 // pred_check_branch
    %167 = sbr.rel (0) target = $region25
  $region24: #{l1_distance_loss.1} parent=0 // pred_region
    _
  $region25: #{l1_distance_loss.1} parent=0 // pred_fallthru
    _
  // Predicated region
  $region26: #{l1_distance_loss.1} parent=0 // pred_check
    _
  $region27: #{l1_distance_loss.1} parent=0 // pred_check_branch
    %169 = sbr.rel (0) target = $region29
  $region28: #{l1_distance_loss.1} parent=0 // pred_region
    _
  $region29: #{l1_distance_loss.1} parent=0 // pred_fallthru
    _

</llo_original>
